<compile_context>
chip_gen: v7x
topology: tpu7x:2x2x1
jax: 0.10.0
libtpu: 0.0.40
codegen_flags: <defaults>
</compile_context>

<pallas_src>
import jax
import jax.numpy as jnp
from jax.experimental import pallas as pl
from jax.experimental.pallas import tpu as pltpu


def _round_up(v, m):
    return (v + m - 1) // m * m


def _vmem_capacity_bytes():
    try:
        return int(pltpu.get_tpu_info().vmem_capacity_bytes)
    except Exception:
        return 64 * 1024 * 1024  # conservative fallback: v7x per-TC VMEM


def _block_spec(shape, index_map, buffers=None):
    """BlockSpec with optional multi-buffering; falls back if unsupported."""
    if buffers is not None and hasattr(pl, "Buffered"):
        try:
            return pl.BlockSpec(shape, index_map,
                                pipeline_mode=pl.Buffered(buffers))
        except TypeError:
            pass
    return pl.BlockSpec(shape, index_map)


# ---------------------------------------------------------------------------
# Pass 1: support = x @ W   (row tiles; W resident in the MXU stream dtype)
# ---------------------------------------------------------------------------
def _support_kernel(x_ref, w_ref, o_ref):
    o_ref[...] = jnp.dot(
        x_ref[...].astype(w_ref.dtype), w_ref[...],
        preferred_element_type=jnp.float32,
    ).astype(o_ref.dtype)


# ---------------------------------------------------------------------------
# Pass 2: out = adj @ support + bias   (row-parallel grid, K reduction)
# ---------------------------------------------------------------------------
def _make_adj_kernel(tk, resident_support, use_scratch):
    def kernel(adj_ref, sup_ref, b_ref, o_ref, *scratch):
        k = pl.program_id(1)
        # With f32 outputs, accumulate directly into the resident output
        # block (its block index is constant along k) — no scratch copy.
        acc_ref = scratch[0] if use_scratch else o_ref

        if resident_support:
            # support lives fully in VMEM; slice this step's K tile.
            k_start = pl.multiple_of(k * tk, 128)
            sup_tile = sup_ref[pl.ds(k_start, tk), :]
        else:
            sup_tile = sup_ref[...]

        # Cast the streamed adj tile to the MXU dtype in-kernel
        # (avoids a wrapper-side N^2 pad+cast HBM round trip).
        partial = jnp.dot(
            adj_ref[...].astype(sup_tile.dtype), sup_tile,
            preferred_element_type=jnp.float32,
        )

        @pl.when(k == 0)
        def _():
            acc_ref[...] = partial

        @pl.when(k > 0)
        def _():
            acc_ref[...] += partial

        @pl.when(k == pl.num_programs(1) - 1)
        def _():
            if use_scratch:
                o_ref[...] = (acc_ref[...] + b_ref[...]).astype(o_ref.dtype)
            else:
                o_ref[...] += b_ref[...]

    return kernel


def gcn_forward(x, adj, weight, bias=None, *, tm=512, tk=2048,
                mxu_dtype=jnp.bfloat16, support_resident=None):
    """GraphConvolution forward: adj @ (x @ weight) + bias.

    x:      [N, F_in]
    adj:    [N, N] dense adjacency (stand-in for torch.spmm's sparse adj);
            may be pre-padded / pre-cast (e.g. bf16) once per graph.
    weight: [F_in, F_out]
    bias:   [F_out] or None
    """
    n, f_in = x.shape
    f_out = weight.shape[1]
    out_dtype = x.dtype
    use_scratch = jnp.dtype(out_dtype) != jnp.dtype(jnp.float32)

    # Lane-dense feature axes (multiples of 128 lanes).
    f_in_p = _round_up(f_in, 128)
    f_out_p = _round_up(f_out, 128)

    # 8-sublane / 128-lane aligned tiles, clamped to the problem size.
    tm = _round_up(max(8, min(tm, _round_up(n, 8))), 8)
    tk = _round_up(max(128, min(tk, _round_up(n, 128))), 128)

    vmem_cap = _vmem_capacity_bytes()
    adj_isz = jnp.dtype(adj.dtype).itemsize
    mxu_isz = jnp.dtype(mxu_dtype).itemsize
    out_isz = jnp.dtype(out_dtype).itemsize
    adj_buffers = 3 if hasattr(pl, "Buffered") else 2
    resident_budget = min(vmem_cap // 3, 48 * 1024 * 1024)

    # Footprint-derived plan with automatic tile back-off (v7x: 64 MiB VMEM).
    def plan(tm_, tk_):
        n_rows_ = _round_up(n, tm_)
        n_cols_ = _round_up(n, tk_)
        sup_total = n_cols_ * f_out_p * mxu_isz
        if support_resident is None:
            resident_ = 2 * sup_total <= resident_budget  # conservative 2 bufs
        else:
            resident_ = bool(support_resident)
        footprint = (
            tm_ * tk_ * adj_isz * adj_buffers                       # adj stream
            + (2 * sup_total if resident_
               else tk_ * f_out_p * mxu_isz * 2)                    # support
            + 8 * f_out_p * 4 * 2                                   # bias (tiny)
            + tm_ * f_out_p * out_isz * 2                           # out tile
            + (tm_ * f_out_p * 4 if use_scratch else 0)             # f32 acc
        )
        return n_rows_, n_cols_, resident_, footprint

    while True:
        n_rows, n_cols, resident, fp2 = plan(tm, tk)
        if fp2 <= int(vmem_cap * 0.75) or (tk <= 512 and tm <= 128):
            break
        if tk > 512:
            tk = _round_up(tk // 2, 128)
        else:
            tm = _round_up(max(tm // 2, 128), 8)

    vmem_limit2 = min(max(int(fp2 * 1.3) + (2 << 20), 16 << 20),
                      int(vmem_cap * 0.9))

    # ---- wrapper-side padding (skipped when shapes already align) ----
    x_p = x
    if (n_cols - n) or (f_in_p - f_in):
        x_p = jnp.pad(x, ((0, n_cols - n), (0, f_in_p - f_in)))
    w_p = weight
    if (f_in_p - f_in) or (f_out_p - f_out):
        w_p = jnp.pad(weight, ((0, f_in_p - f_in), (0, f_out_p - f_out)))
    w_p = w_p.astype(mxu_dtype)
    adj_p = adj  # keep original dtype; cast per tile inside the kernel
    if (n_rows - adj.shape[0]) or (n_cols - adj.shape[1]):
        adj_p = jnp.pad(adj, ((0, n_rows - adj.shape[0]),
                              (0, n_cols - adj.shape[1])))
    if bias is None:
        b_p = jnp.zeros((1, f_out_p), jnp.float32)
    else:
        b_p = jnp.pad(bias.astype(jnp.float32),
                      (0, f_out_p - f_out)).reshape(1, f_out_p)

    # ---- pass 1: support = x @ W ----
    # TODO(synk): add a K-tiling grid axis over f_in for very large f_in/f_out.
    fp1 = (tk * f_in_p * x.dtype.itemsize * 2
           + f_in_p * f_out_p * mxu_isz * 2
           + tk * f_out_p * mxu_isz * 2)
    vmem_limit1 = min(max(int(fp1 * 1.3) + (2 << 20), 16 << 20),
                      int(vmem_cap * 0.9))

    sup = pl.pallas_call(
        _support_kernel,
        out_shape=jax.ShapeDtypeStruct((n_cols, f_out_p), mxu_dtype),
        grid_spec=pltpu.PrefetchScalarGridSpec(
            num_scalar_prefetch=0,
            grid=(n_cols // tk,),
            in_specs=[
                pl.BlockSpec((tk, f_in_p), lambda i: (i, 0)),
                pl.BlockSpec((f_in_p, f_out_p), lambda i: (0, 0)),
            ],
            out_specs=pl.BlockSpec((tk, f_out_p), lambda i: (i, 0)),
        ),
        compiler_params=pltpu.CompilerParams(
            dimension_semantics=("parallel",),
            vmem_limit_bytes=vmem_limit1,
        ),
    )(x_p, w_p)

    # ---- pass 2: out = adj @ support + bias ----
    if resident:
        # Full-extent support: constant block index => DMA'd once, resident.
        sup_spec = pl.BlockSpec((n_cols, f_out_p), lambda i, k: (0, 0))
    else:
        sup_spec = pl.BlockSpec((tk, f_out_p), lambda i, k: (k, 0))

    out_p = pl.pallas_call(
        _make_adj_kernel(tk, resident, use_scratch),
        out_shape=jax.ShapeDtypeStruct((n_rows, f_out_p), out_dtype),
        grid_spec=pltpu.PrefetchScalarGridSpec(
            num_scalar_prefetch=0,
            grid=(n_rows // tm, n_cols // tk),
            in_specs=[
                _block_spec((tm, tk), lambda i, k: (i, k),
                            buffers=adj_buffers),                  # adj stream
                sup_spec,                                          # support
                pl.BlockSpec((1, f_out_p), lambda i, k: (0, 0)),   # bias
            ],
            out_specs=pl.BlockSpec((tm, f_out_p), lambda i, k: (i, 0)),
            scratch_shapes=([pltpu.VMEM((tm, f_out_p), jnp.float32)]
                            if use_scratch else []),
        ),
        compiler_params=pltpu.CompilerParams(
            dimension_semantics=("parallel", "arbitrary"),
            vmem_limit_bytes=vmem_limit2,
        ),
    )(adj_p, sup, b_p)

    return out_p[:n, :f_out]


def _reference(x, adj, weight, bias):
    support = x @ weight
    out = adj @ support
    if bias is not None:
        out = out + bias
    return out


if __name__ == "__main__":
    # Feature sizes deliberately not multiples of 128 to exercise lane padding;
    # tm=tk=128 gives a 2x2 grid so the K-reduction accumulate path runs.
    N, F_IN, F_OUT = 256, 96, 80
    key = jax.random.PRNGKey(0)
    kx, kadj, kw, kb = jax.random.split(key, 4)

    x = jax.random.normal(kx, (N, F_IN), dtype=jnp.float32)

    # Row-normalized dense adjacency (stand-in for the sparse adj in spmm).
    adj_raw = (jax.random.uniform(kadj, (N, N)) > 0.5).astype(jnp.float32)
    adj_raw = adj_raw + jnp.eye(N, dtype=jnp.float32)
    adj = adj_raw / jnp.sum(adj_raw, axis=1, keepdims=True)

    # Parameter init mirroring reset_parameters(): uniform(-stdv, stdv).
    stdv = 1.0 / (F_OUT ** 0.5)
    weight = jax.random.uniform(kw, (F_IN, F_OUT), minval=-stdv, maxval=stdv,
                                dtype=jnp.float32)
    bias = jax.random.uniform(kb, (F_OUT,), minval=-stdv, maxval=stdv,
                              dtype=jnp.float32)

    ref = _reference(x, adj, weight, bias)
    ref_nb = _reference(x, adj, weight, None)

    # Multi-step K reduction, VMEM-resident support, direct-output accumulate.
    out = gcn_forward(x, adj, weight, bias, tm=128, tk=128)
    jax.block_until_ready(out)
    assert out.shape == (N, F_OUT)
    assert jnp.allclose(out, ref, atol=2e-2, rtol=2e-2), "mismatch vs reference"

    # Default tiles, no bias, forced streamed (non-resident) support path.
    out_nb = gcn_forward(x, adj, weight, None, support_resident=False)
    jax.block_until_ready(out_nb)
    assert jnp.allclose(out_nb, ref_nb, atol=2e-2, rtol=2e-2), \
        "mismatch vs reference (no bias)"

    print("KERNEL_OK")
</pallas_src>

<mosaic_0001>
module attributes {stable_mosaic.version = 11 : i64} {
  func.func @_support_kernel(%arg0: i32, %arg1: memref<128x128xf32, #tpu.memory_space<vmem>>, %arg2: memref<128x128xbf16, #tpu.memory_space<vmem>>, %arg3: memref<128x128xbf16, #tpu.memory_space<vmem>>) attributes {dimension_semantics = [#tpu.dimension_semantics<parallel>], iteration_bounds = array<i64: 2>, scalar_prefetch = 0 : i64, scratch_operands = 0 : i64, tpu.core_type = #tpu.core_type<tc>, window_params = [{transform_indices = @transform_0, window_bounds = array<i64: 128, 128>}, {pipeline_mode = #tpu.pipeline_mode<synchronous>, transform_indices = @transform_1, window_bounds = array<i64: 128, 128>}, {transform_indices = @transform_2, window_bounds = array<i64: 128, 128>}]} {
    %c0 = arith.constant 0 : index
    %c0_0 = arith.constant 0 : index
    %0 = vector.load %arg1[%c0, %c0_0] : memref<128x128xf32, #tpu.memory_space<vmem>>, vector<128x128xf32>
    %1 = arith.truncf %0 : vector<128x128xf32> to vector<128x128xbf16>
    %c0_1 = arith.constant 0 : index
    %c0_2 = arith.constant 0 : index
    %2 = vector.load %arg2[%c0_1, %c0_2] : memref<128x128xbf16, #tpu.memory_space<vmem>>, vector<128x128xbf16>
    %cst = arith.constant dense<0.000000e+00> : vector<128x128xf32>
    %3 = tpu.matmul %1, %2, %cst {dimension_numbers = #tpu.dot_dimension_numbers<[1], [0], [0], [1], [0, 0, 1, 1], [], []>} : vector<128x128xbf16>, vector<128x128xbf16>, vector<128x128xf32> -> vector<128x128xf32>
    %4 = arith.truncf %3 : vector<128x128xf32> to vector<128x128xbf16>
    %c0_3 = arith.constant 0 : index
    %c0_4 = arith.constant 0 : index
    %5 = vector.load %arg3[%c0_3, %c0_4] : memref<128x128xbf16, #tpu.memory_space<vmem>>, vector<128x128xbf16>
    tpu.vector_store %arg3[%c0_3, %c0_4], %4 {strides = array<i32>} : memref<128x128xbf16, #tpu.memory_space<vmem>>, vector<128x128xbf16>,
    return
  }
  func.func @transform_0(%arg0: i32) -> (i32, i32) {
    %c0_i32 = arith.constant 0 : i32
    %c0_i32_0 = arith.constant 0 : i32
    return %arg0, %c0_i32 : i32, i32
  }
  func.func @transform_1(%arg0: i32) -> (i32, i32) {
    %c0_i32 = arith.constant 0 : i32
    %c0_i32_0 = arith.constant 0 : i32
    %c0_i32_1 = arith.constant 0 : i32
    return %c0_i32, %c0_i32_0 : i32, i32
  }
  func.func @transform_2(%arg0: i32) -> (i32, i32) {
    %c0_i32 = arith.constant 0 : i32
    %c0_i32_0 = arith.constant 0 : i32
    return %arg0, %c0_i32 : i32, i32
  }
}

</mosaic_0001>

<llo_original>
// kernel: tpu_custom_call.1
$region0: #{tpu_custom_call.1}
  #allocation0 [shape = 'u32[]', space=smem, size = 0x4, offset = 0x4, fixed_abs, tag = 'smem constant byte address 0x4 - core index']
  #allocation1 [shape = 'u32[144,128]{1,0:T(1,128)}', space=vmem, size = 0x12000, scoped, tag = 'internal scratch']
  %s0 = inlined_call_operand.hbm [shape: f32[256,128], index: 0, kind: input, shape index: {}]
  %s1 = inlined_call_operand.hbm [shape: bf16[128,128], index: 1, kind: input, shape index: {}]
  %s2 = inlined_call_operand.hbm [shape: bf16[256,128], index: 2, kind: output, shape index: {}]
  %s3 = sld [smem:[#allocation0]]
  $region49: #{tpu_custom_call.1} parent=0
    _
  %s5 = ssub.s32 1, %s3
  %s6 = scalar_select 0, %s5, %s3
  $region1: #{tpu_custom_call.1} parent=0
    #allocation2 [shape = 'u8[131072]{0}', space=vmem, size = 0x20000, scoped, tag = 'input window, operand 0']
    #allocation3 [shape = 's32[2]{0}', space=sflag, size = 0x8, scoped, tag = 'scoped memory for tpu_custom_call.1']
    #allocation4 [shape = 's32[2]{0}', space=sflag, size = 0x8, scoped, tag = 'scoped memory for tpu_custom_call.1']
    #allocation5 [shape = 'u8[32768]{0}', space=vmem, size = 0x8000, scoped, tag = 'input window, operand 1, single buffered']
    #allocation6 [shape = 's32[1]{0}', space=sflag, size = 0x4, scoped, tag = 'scoped memory for tpu_custom_call.1']
    #allocation7 [shape = 'u8[65536]{0}', space=vmem, size = 0x10000, scoped, tag = 'output window, operand 0']
    %7 = vsyncpa [#allocation3], 0
    %s8 = scalar_lea.sflag [#allocation3], 1
    %9 = vsyncpa %s8, 0
    %10 = vsyncpa [#allocation6], 0
    %11 = vsyncpa [#allocation4], 0
    %s12 = scalar_lea.sflag [#allocation4], 1
    %13 = vsyncpa %s12, 0
    loop: start=0, step=1, limit=4
    $region2: #{tpu_custom_call.1} parent=1 // loop_pre_header
      _
    $region3: #{tpu_custom_call.1} parent=1 // loop_header
      %s15 = sphi 0, %s19
      %p16 = scmp.ge.s32.totalorder %s15, 4
      %s25 = sphi 0, %s27
      %s28 = sphi 0, %s25
      %s29 = sphi 0, %s28
      %s45 = sphi 0, %s29
      %s49 = sphi 0, %s49
      %s51 = sphi 0, %s49
      %s52 = sphi 0, %s51
      %s66 = sphi 0, %s52
      %s72 = sphi 0, %s74
      %s75 = sphi 0, %s72
      %s76 = sphi 0, %s75
      %s92 = sphi 0, %s76
    $region4: #{tpu_custom_call.1} parent=1 // loop_header_branch
      %18 = sbr.rel (%p16) target = $region8
    $region5: #{tpu_custom_call.1} parent=1 // loop_body
      %s20 = ssub.s32 %s15, 1
      %s21 = ssub.s32 %s15, 2
      %s22 = sadd.s32 %s15, 1
      %s23 = ssub.s32 %s15, %s22
      %p24 = scmp.eq.s32.totalorder %s23, 0
      %s26 = sadd.s32 %s25, 1
      %s27 = scalar_select %p24, %s25, %s26
      %p30 = pneg %p24
      %p31 = scmp.eq.s32.totalorder %s15, 1
      %p32 = por %p30, %p31
      %p33 = scmp.ne.s32.totalorder %s25, %s28
      %p34 = scmp.eq.s32.totalorder %s15, 0
      %p35 = por %p33, %p34
      %p36 = scmp.ne.s32.totalorder %s25, %s28
      %p37 = scmp.eq.s32.totalorder %s20, 1
      %p38 = por %p36, %p37
      %p39 = scmp.ne.s32.totalorder %s28, %s29
      %p40 = scmp.eq.s32.totalorder %s20, 0
      %p41 = por %p39, %p40
      %p42 = scmp.ne.s32.totalorder %s28, %s29
      %p43 = scmp.eq.s32.totalorder %s21, 1
      %p44 = por %p42, %p43
      %p46 = scmp.ne.s32.totalorder %s29, %s45
      %p47 = scmp.eq.s32.totalorder %s21, 0
      %p48 = por %p46, %p47
      %s50 = sadd.s32 %s49, 1
      %p53 = scmp.eq.s32.totalorder %s15, 1
      %p54 = scmp.ne.s32.totalorder %s49, %s51
      %p55 = scmp.eq.s32.totalorder %s15, 0
      %p56 = por %p54, %p55
      %p57 = scmp.ne.s32.totalorder %s49, %s51
      %p58 = scmp.eq.s32.totalorder %s20, 1
      %p59 = por %p57, %p58
      %p60 = scmp.ne.s32.totalorder %s51, %s52
      %p61 = scmp.eq.s32.totalorder %s20, 0
      %p62 = por %p60, %p61
      %p63 = scmp.ne.s32.totalorder %s51, %s52
      %p64 = scmp.eq.s32.totalorder %s21, 1
      %p65 = por %p63, %p64
      %p67 = scmp.ne.s32.totalorder %s52, %s66
      %p68 = scmp.eq.s32.totalorder %s21, 0
      %p69 = por %p67, %p68
      %s70 = ssub.s32 %s15, %s22
      %p71 = scmp.eq.s32.totalorder %s70, 0
      %s73 = sadd.s32 %s72, 1
      %s74 = scalar_select %p71, %s72, %s73
      %p77 = pneg %p71
      %p78 = scmp.eq.s32.totalorder %s15, 1
      %p79 = por %p77, %p78
      %p80 = scmp.ne.s32.totalorder %s72, %s75
      %p81 = scmp.eq.s32.totalorder %s15, 0
      %p82 = por %p80, %p81
      %p83 = scmp.ne.s32.totalorder %s72, %s75
      %p84 = scmp.eq.s32.totalorder %s20, 1
      %p85 = por %p83, %p84
      %p86 = scmp.ne.s32.totalorder %s75, %s76
      %p87 = scmp.eq.s32.totalorder %s20, 0
      %p88 = por %p86, %p87
      %p89 = scmp.ne.s32.totalorder %s75, %s76
      %p90 = scmp.eq.s32.totalorder %s21, 1
      %p91 = por %p89, %p90
      %p93 = scmp.ne.s32.totalorder %s76, %s92
      %p94 = scmp.eq.s32.totalorder %s21, 0
      %p95 = por %p93, %p94
      %p96 = scmp.le.s32.totalorder 1, %s15
      %p97 = scmp.lt.s32.totalorder %s15, 3
      %p98 = pnand %p96, %p97
      %p99 = pneg %p98
      // Predicated region
      $region9: #{tpu_custom_call.1} parent=5 // pred_check
        _
      $region10: #{tpu_custom_call.1} parent=5 // pred_check_branch
        %101 = sbr.rel (%p98) target = $region12
      $region11: #{tpu_custom_call.1} parent=5 // pred_region
        %s102 = ssub.s32 %s15, 1
        // Predicated region
        $region13: #{tpu_custom_call.1} parent=11 // pred_check
          %p103 = pneg %p62
        $region14: #{tpu_custom_call.1} parent=11 // pred_check_branch
          %105 = sbr.rel (%p103) target = $region16
        $region15: #{tpu_custom_call.1} parent=11 // pred_region
          %s107 = ssub.s32 1024, 1024
          %108 = vsyncadd [#allocation6], %s107
          %s109 = sshll.u32 [#allocation5], 4
          %s110 = int_to_ptr.vmem [resolvable:$true] %s109
          %115 = dma.hbm_to_vmem [thread:$0]  %s1, 1024, %s110, [#allocation6], 64, 64, 4
        $region16: #{tpu_custom_call.1} parent=11 // pred_fallthru
          _
      $region12: #{tpu_custom_call.1} parent=5 // pred_fallthru
        _
      %p116 = scmp.lt.s32.totalorder %s15, 2
      // Predicated region
      $region17: #{tpu_custom_call.1} parent=5 // pred_check
        %p117 = pneg %p116
      $region18: #{tpu_custom_call.1} parent=5 // pred_check_branch
        %119 = sbr.rel (%p117) target = $region20
      $region19: #{tpu_custom_call.1} parent=5 // pred_region
        // Predicated region
        $region21: #{tpu_custom_call.1} parent=19 // pred_check
          %p120 = pneg %p35
        $region22: #{tpu_custom_call.1} parent=19 // pred_check_branch
          %122 = sbr.rel (%p120) target = $region24
        $region23: #{tpu_custom_call.1} parent=19 // pred_region
          %s123 = sand.u32 %s25, 1
          %s124 = scalar_lea.sflag [#allocation3], %s123
          %s125 = sand.u32 %s25, 1
          %s126 = smul.addr %s125, 128
          %s127 = scalar_lea.vmem [#allocation2], %s126
          %s128 = smul.u32 16, %s15
          %s130 = ssub.s32 2048, 2048
          %131 = vsyncadd %s124, %s130
          %s132 = smul.addr %s128, 128
          %s133 = scalar_lea.hbm %s0, %s132
          %s134 = sshll.u32 %s127, 4
          %s135 = int_to_ptr.vmem [resolvable:$true] %s134
          %140 = dma.hbm_to_vmem [thread:$0]  %s133, 2048, %s135, %s124, 128, 128, 8
        $region24: #{tpu_custom_call.1} parent=19 // pred_fallthru
          _
      $region20: #{tpu_custom_call.1} parent=5 // pred_fallthru
        _
      %p141 = scmp.le.s32.totalorder 1, %s15
      %p142 = scmp.lt.s32.totalorder %s15, 3
      %p143 = pnand %p141, %p142
      %p144 = pneg %p143
      // Predicated region
      $region25: #{tpu_custom_call.1} parent=5 // pred_check
        _
      $region26: #{tpu_custom_call.1} parent=5 // pred_check_branch
        %146 = sbr.rel (%p143) target = $region28
      $region27: #{tpu_custom_call.1} parent=5 // pred_region
        %s147 = ssub.s32 %s15, 1
        %s148 = sand.u32 %s28, 1
        %s149 = scalar_lea.sflag [#allocation3], %s148
        %s150 = sand.u32 %s28, 1
        %s151 = smul.addr %s150, 128
        %s152 = scalar_lea.vmem [#allocation2], %s151
        // Predicated region
        $region29: #{tpu_custom_call.1} parent=27 // pred_check
          %p153 = pneg %p41
        $region30: #{tpu_custom_call.1} parent=27 // pred_check_branch
          %155 = sbr.rel (%p153) target = $region32
        $region31: #{tpu_custom_call.1} parent=27 // pred_region
          %156 = dma.done %s149, 2048
        $region32: #{tpu_custom_call.1} parent=27 // pred_fallthru
          _
        // Predicated region
        $region33: #{tpu_custom_call.1} parent=27 // pred_check
          %p157 = pneg %p62
        $region34: #{tpu_custom_call.1} parent=27 // pred_check_branch
          %159 = sbr.rel (%p157) target = $region36
        $region35: #{tpu_custom_call.1} parent=27 // pred_region
          %160 = dma.done [#allocation6], 1024
        $region36: #{tpu_custom_call.1} parent=27 // pred_fallthru
          _
        %s161 = sand.u32 %s28, 1
        %s162 = scalar_lea.sflag [#allocation3], %s161
        %s163 = sand.u32 %s28, 1
        %s164 = smul.addr %s163, 128
        %s165 = scalar_lea.vmem [#allocation2], %s164
        %p166 = pneg %p41
        %p167 = pneg %p38
        %p168 = pneg %p62
        %p169 = pneg %p59
        %p170 = pneg %p88
        %p171 = pneg %p85
        %s172 = sand.u32 %s75, 1
        %s173 = scalar_lea.sflag [#allocation4], %s172
        %s174 = sand.u32 %s75, 1
        %s175 = smul.addr %s174, 64
        %s176 = scalar_lea.vmem [#allocation7], %s175
        %s177 = smul.u32 16, %s20
        %s178 = smul.u32 16, %s20
        %v180 = vld [vmem:[%s152] sm:$0xff]
        %v181 = vld [vmem:[%s152 + $0x8] sm:$0xff]
        %v182 = vld [vmem:[%s152 + $0x10] sm:$0xff]
        %v183 = vld [vmem:[%s152 + $0x18] sm:$0xff]
        %v184 = vld [vmem:[%s152 + $0x20] sm:$0xff]
        %v185 = vld [vmem:[%s152 + $0x28] sm:$0xff]
        %v186 = vld [vmem:[%s152 + $0x30] sm:$0xff]
        %v187 = vld [vmem:[%s152 + $0x38] sm:$0xff]
        %v188 = vld [vmem:[%s152 + $0x40] sm:$0xff]
        %v189 = vld [vmem:[%s152 + $0x48] sm:$0xff]
        %v190 = vld [vmem:[%s152 + $0x50] sm:$0xff]
        %v191 = vld [vmem:[%s152 + $0x58] sm:$0xff]
        %v192 = vld [vmem:[%s152 + $0x60] sm:$0xff]
        %v193 = vld [vmem:[%s152 + $0x68] sm:$0xff]
        %v194 = vld [vmem:[%s152 + $0x70] sm:$0xff]
        %v195 = vld [vmem:[%s152 + $0x78] sm:$0xff]
        %v196 = vpack.c.bf16 %v181, %v180
        %v197 = vpack.c.bf16 %v183, %v182
        %v198 = vpack.c.bf16 %v185, %v184
        %v199 = vpack.c.bf16 %v187, %v186
        %v200 = vpack.c.bf16 %v189, %v188
        %v201 = vpack.c.bf16 %v191, %v190
        %v202 = vpack.c.bf16 %v193, %v192
        %v203 = vpack.c.bf16 %v195, %v194
        %v204 = vld [vmem:[#allocation5] sm:$0xf]
        %v205 = vld [vmem:[#allocation5 + $0x4] sm:$0xf]
        %v206 = vld [vmem:[#allocation5 + $0x8] sm:$0xf]
        %v207 = vld [vmem:[#allocation5 + $0xc] sm:$0xf]
        %v208 = vld [vmem:[#allocation5 + $0x10] sm:$0xf]
        %v209 = vld [vmem:[#allocation5 + $0x14] sm:$0xf]
        %v210 = vld [vmem:[#allocation5 + $0x18] sm:$0xf]
        %v211 = vld [vmem:[#allocation5 + $0x1c] sm:$0xf]
        %v212 = vld [vmem:[#allocation5 + $0x20] sm:$0xf]
        %v213 = vld [vmem:[#allocation5 + $0x24] sm:$0xf]
        %v214 = vld [vmem:[#allocation5 + $0x28] sm:$0xf]
        %v215 = vld [vmem:[#allocation5 + $0x2c] sm:$0xf]
        %v216 = vld [vmem:[#allocation5 + $0x30] sm:$0xf]
        %v217 = vld [vmem:[#allocation5 + $0x34] sm:$0xf]
        %v218 = vld [vmem:[#allocation5 + $0x38] sm:$0xf]
        %v219 = vld [vmem:[#allocation5 + $0x3c] sm:$0xf]
        %v236 = vunpack.c.l.b16 %v204
        %v237 = vunpack.c.l.b16 %v205
        %v238 = vunpack.c.l.b16 %v206
        %v239 = vunpack.c.l.b16 %v207
        %v240 = vunpack.c.l.b16 %v208
        %v241 = vunpack.c.l.b16 %v209
        %v242 = vunpack.c.l.b16 %v210
        %v243 = vunpack.c.l.b16 %v211
        %v244 = vunpack.c.l.b16 %v212
        %v245 = vunpack.c.l.b16 %v213
        %v246 = vunpack.c.l.b16 %v214
        %v247 = vunpack.c.l.b16 %v215
        %v248 = vunpack.c.l.b16 %v216
        %v249 = vunpack.c.l.b16 %v217
        %v250 = vunpack.c.l.b16 %v218
        %v251 = vunpack.c.l.b16 %v219
        %v252 = vpack.c.b16 %v237, %v236
        %v253 = vpack.c.b16 %v239, %v238
        %v254 = vpack.c.b16 %v241, %v240
        %v255 = vpack.c.b16 %v243, %v242
        %v256 = vpack.c.b16 %v245, %v244
        %v257 = vpack.c.b16 %v247, %v246
        %v258 = vpack.c.b16 %v249, %v248
        %v259 = vpack.c.b16 %v251, %v250
        %268 = vmatprep.subr.bf16.mxu0 0
        %269 = vmatpush1.bf16.msra.mxu0 %v252
        %270 = vmatprep.subr.bf16.mxu0 0
        %271 = vmatpush1.bf16.msra.mxu0 %v253
        %272 = vmatprep.subr.bf16.mxu0 0
        %273 = vmatpush1.bf16.msra.mxu0 %v254
        %274 = vmatprep.subr.bf16.mxu0 0
        %275 = vmatpush1.bf16.msra.mxu0 %v255
        %276 = vmatprep.subr.bf16.mxu0 0
        %277 = vmatpush1.bf16.msra.mxu0 %v256
        %278 = vmatprep.subr.bf16.mxu0 0
        %279 = vmatpush1.bf16.msra.mxu0 %v257
        %280 = vmatprep.subr.bf16.mxu0 0
        %281 = vmatpush1.bf16.msra.mxu0 %v258
        %282 = vmatprep.subr.bf16.mxu0 0
        %283 = vmatpush1.bf16.msra.mxu0 %v259
        %284 = vmatprep.subr.bf16.mxu0 0
        %285 = vmatpush1.bf16.msra.mxu0 0
        %286 = vmatprep.subr.bf16.mxu0 0
        %287 = vmatpush1.bf16.msra.mxu0 0
        %288 = vmatprep.subr.bf16.mxu0 0
        %289 = vmatpush1.bf16.msra.mxu0 0
        %290 = vmatprep.subr.bf16.mxu0 0
        %291 = vmatpush1.bf16.msra.mxu0 0
        %292 = vmatprep.subr.bf16.mxu0 0
        %293 = vmatpush1.bf16.msra.mxu0 0
        %294 = vmatprep.subr.bf16.mxu0 0
        %295 = vmatpush1.bf16.msra.mxu0 0
        %296 = vmatprep.subr.bf16.mxu0 0
        %297 = vmatpush1.bf16.msra.mxu0 0
        %298 = vmatprep.subr.bf16.mxu0 0
        %299 = vmatpush1.bf16.msra.mxu0 0
        %300 = vmatprep.mubr.bf16.mxu0 0
        %301 = vmatmul.mubr.bf16.gmra.mrb[0].mxu0 %v196
        %v302 = vpop.f32.mrb[0].mxu0
        %v303 = vadd.f32 0.0, %v302
        %v304 = vpop.f32.mrb[0].mxu0
        %v305 = vpop.f32.mrb[0].mxu0
        %v306 = vadd.f32 0.0, %v305
        %v307 = vpop.f32.mrb[0].mxu0
        %308 = vmatprep.mubr.bf16.mxu0 0
        %309 = vmatmul.mubr.bf16.gmra.mrb[0].mxu0 %v197
        %v310 = vpop.f32.mrb[0].mxu0
        %v311 = vadd.f32 0.0, %v310
        %v312 = vpop.f32.mrb[0].mxu0
        %v313 = vpop.f32.mrb[0].mxu0
        %v314 = vadd.f32 0.0, %v313
        %v315 = vpop.f32.mrb[0].mxu0
        %316 = vmatprep.mubr.bf16.mxu0 0
        %317 = vmatmul.mubr.bf16.gmra.mrb[0].mxu0 %v198
        %v318 = vpop.f32.mrb[0].mxu0
        %v319 = vadd.f32 0.0, %v318
        %v320 = vpop.f32.mrb[0].mxu0
        %v321 = vpop.f32.mrb[0].mxu0
        %v322 = vadd.f32 0.0, %v321
        %v323 = vpop.f32.mrb[0].mxu0
        %324 = vmatprep.mubr.bf16.mxu0 0
        %325 = vmatmul.mubr.bf16.gmra.mrb[0].mxu0 %v199
        %v326 = vpop.f32.mrb[0].mxu0
        %v327 = vadd.f32 0.0, %v326
        %v328 = vpop.f32.mrb[0].mxu0
        %v329 = vpop.f32.mrb[0].mxu0
        %v330 = vadd.f32 0.0, %v329
        %v331 = vpop.f32.mrb[0].mxu0
        %332 = vmatprep.mubr.bf16.mxu0 0
        %333 = vmatmul.mubr.bf16.gmra.mrb[0].mxu0 %v200
        %v334 = vpop.f32.mrb[0].mxu0
        %v335 = vadd.f32 0.0, %v334
        %v336 = vpop.f32.mrb[0].mxu0
        %v337 = vpop.f32.mrb[0].mxu0
        %v338 = vadd.f32 0.0, %v337
        %v339 = vpop.f32.mrb[0].mxu0
        %340 = vmatprep.mubr.bf16.mxu0 0
        %341 = vmatmul.mubr.bf16.gmra.mrb[0].mxu0 %v201
        %v342 = vpop.f32.mrb[0].mxu0
        %v343 = vadd.f32 0.0, %v342
        %v344 = vpop.f32.mrb[0].mxu0
        %v345 = vpop.f32.mrb[0].mxu0
        %v346 = vadd.f32 0.0, %v345
        %v347 = vpop.f32.mrb[0].mxu0
        %348 = vmatprep.mubr.bf16.mxu0 0
        %349 = vmatmul.mubr.bf16.gmra.mrb[0].mxu0 %v202
        %v350 = vpop.f32.mrb[0].mxu0
        %v351 = vadd.f32 0.0, %v350
        %v352 = vpop.f32.mrb[0].mxu0
        %v353 = vpop.f32.mrb[0].mxu0
        %v354 = vadd.f32 0.0, %v353
        %v355 = vpop.f32.mrb[0].mxu0
        %356 = vmatprep.mubr.bf16.mxu0 0
        %357 = vmatmul.mubr.bf16.gmra.mrb[0].mxu0 %v203
        %v358 = vpop.f32.mrb[0].mxu0
        %v359 = vadd.f32 0.0, %v358
        %v360 = vpop.f32.mrb[0].mxu0
        %v361 = vpop.f32.mrb[0].mxu0
        %v362 = vadd.f32 0.0, %v361
        %v363 = vpop.f32.mrb[0].mxu0
        %364 = vdwg.mxu0
        %v365 = vpack.c.bf16 %v306, %v303
        %v366 = vpack.c.bf16 %v314, %v311
        %v367 = vpack.c.bf16 %v322, %v319
        %v368 = vpack.c.bf16 %v330, %v327
        %v369 = vpack.c.bf16 %v338, %v335
        %v370 = vpack.c.bf16 %v346, %v343
        %v371 = vpack.c.bf16 %v354, %v351
        %v372 = vpack.c.bf16 %v362, %v359
        %v381 = vunpack.c.l.b16 %v365
        %v382 = vunpack.c.h.b16 %v365
        %v383 = vunpack.c.l.b16 %v366
        %v384 = vunpack.c.h.b16 %v366
        %v385 = vunpack.c.l.b16 %v367
        %v386 = vunpack.c.h.b16 %v367
        %v387 = vunpack.c.l.b16 %v368
        %v388 = vunpack.c.h.b16 %v368
        %v389 = vunpack.c.l.b16 %v369
        %v390 = vunpack.c.h.b16 %v369
        %v391 = vunpack.c.l.b16 %v370
        %v392 = vunpack.c.h.b16 %v370
        %v393 = vunpack.c.l.b16 %v371
        %v394 = vunpack.c.h.b16 %v371
        %v395 = vunpack.c.l.b16 %v372
        %v396 = vunpack.c.h.b16 %v372
        %v397 = vpack.c.b16 %v381, %v381
        %v398 = vpack.c.b16 %v382, %v382
        %v399 = vpack.c.b16 %v383, %v383
        %v400 = vpack.c.b16 %v384, %v384
        %v401 = vpack.c.b16 %v385, %v385
        %v402 = vpack.c.b16 %v386, %v386
        %v403 = vpack.c.b16 %v387, %v387
        %v404 = vpack.c.b16 %v388, %v388
        %v405 = vpack.c.b16 %v389, %v389
        %v406 = vpack.c.b16 %v390, %v390
        %v407 = vpack.c.b16 %v391, %v391
        %v408 = vpack.c.b16 %v392, %v392
        %v409 = vpack.c.b16 %v393, %v393
        %v410 = vpack.c.b16 %v394, %v394
        %v411 = vpack.c.b16 %v395, %v395
        %v412 = vpack.c.b16 %v396, %v396
        %429 = vst [vmem:[%s176] sm:$0xf] %v397
        %430 = vst [vmem:[%s176 + $0x4] sm:$0xf] %v398
        %431 = vst [vmem:[%s176 + $0x8] sm:$0xf] %v399
        %432 = vst [vmem:[%s176 + $0xc] sm:$0xf] %v400
        %433 = vst [vmem:[%s176 + $0x10] sm:$0xf] %v401
        %434 = vst [vmem:[%s176 + $0x14] sm:$0xf] %v402
        %435 = vst [vmem:[%s176 + $0x18] sm:$0xf] %v403
        %436 = vst [vmem:[%s176 + $0x1c] sm:$0xf] %v404
        %437 = vst [vmem:[%s176 + $0x20] sm:$0xf] %v405
        %438 = vst [vmem:[%s176 + $0x24] sm:$0xf] %v406
        %439 = vst [vmem:[%s176 + $0x28] sm:$0xf] %v407
        %440 = vst [vmem:[%s176 + $0x2c] sm:$0xf] %v408
        %441 = vst [vmem:[%s176 + $0x30] sm:$0xf] %v409
        %442 = vst [vmem:[%s176 + $0x34] sm:$0xf] %v410
        %443 = vst [vmem:[%s176 + $0x38] sm:$0xf] %v411
        %444 = vst [vmem:[%s176 + $0x3c] sm:$0xf] %v412
        %s445 = sand.u32 %s75, 1
        %s446 = scalar_lea.sflag [#allocation4], %s445
        %s447 = sand.u32 %s75, 1
        %s448 = smul.addr %s447, 64
        %s449 = scalar_lea.vmem [#allocation7], %s448
        // Predicated region
        $region37: #{tpu_custom_call.1} parent=27 // pred_check
          %p450 = pneg %p85
        $region38: #{tpu_custom_call.1} parent=27 // pred_check_branch
          %452 = sbr.rel (%p450) target = $region40
        $region39: #{tpu_custom_call.1} parent=27 // pred_region
          %s453 = smul.u32 16, %s20
          %s455 = ssub.s32 1024, 1024
          %456 = vsyncadd %s446, %s455
          %s457 = smul.addr %s453, 64
          %s458 = scalar_lea.hbm %s2, %s457
          %s459 = sshll.u32 %s449, 4
          %s460 = int_to_ptr.vmem [resolvable:$true] %s459
          %465 = dma.vmem_to_hbm [thread:$0]  %s460, 1024, %s458, %s446, 64, 64, 4
        $region40: #{tpu_custom_call.1} parent=27 // pred_fallthru
          _
      $region28: #{tpu_custom_call.1} parent=5 // pred_fallthru
        _
      %p466 = scmp.le.s32.totalorder 2, %s15
      // Predicated region
      $region41: #{tpu_custom_call.1} parent=5 // pred_check
        %p467 = pneg %p466
      $region42: #{tpu_custom_call.1} parent=5 // pred_check_branch
        %469 = sbr.rel (%p467) target = $region44
      $region43: #{tpu_custom_call.1} parent=5 // pred_region
        %s470 = ssub.s32 %s15, 2
        // Predicated region
        $region45: #{tpu_custom_call.1} parent=43 // pred_check
          %p471 = pneg %p91
        $region46: #{tpu_custom_call.1} parent=43 // pred_check_branch
          %473 = sbr.rel (%p471) target = $region48
        $region47: #{tpu_custom_call.1} parent=43 // pred_region
          %s474 = sand.u32 %s76, 1
          %s475 = scalar_lea.sflag [#allocation4], %s474
          %s476 = sand.u32 %s76, 1
          %s477 = smul.addr %s476, 64
          %s478 = scalar_lea.vmem [#allocation7], %s477
          %479 = dma.done %s475, 1024
        $region48: #{tpu_custom_call.1} parent=43 // pred_fallthru
          _
      $region44: #{tpu_custom_call.1} parent=5 // pred_fallthru
        _
    $region6: #{tpu_custom_call.1} parent=1 // loop_footer
      %s19 = sadd.s32 1, %s15
    $region7: #{tpu_custom_call.1} parent=1 // loop_footer_branch
      %14 = sbr.rel target = $region3
    $region8: #{tpu_custom_call.1} parent=1 // loop_exit
      _
    %480 = vsyncpa [#allocation3], 1
    %s481 = scalar_lea.sflag [#allocation3], 1
    %482 = vsyncpa %s481, 1
    %483 = vsyncpa [#allocation6], 1
    %484 = vsyncpa [#allocation4], 1
    %s485 = scalar_lea.sflag [#allocation4], 1
    %486 = vsyncpa %s485, 1

</llo_original>
